<compile_context>
chip_gen: v5e
topology: v5e:2x2
jax: 0.10.0
libtpu: 0.0.40
codegen_flags: <defaults>
</compile_context>

<pallas_src>
import functools

import jax
import jax.numpy as jnp
from jax.experimental import pallas as pl
from jax.experimental.pallas import tpu as pltpu


def _identity_dma_kernel(x_hbm, o_hbm, sem, *, chunks):
    """Copy x_hbm -> o_hbm with direct HBM->HBM DMA(s). No VMEM staging."""
    if chunks is None:
        # Single DMA covering the whole array (any rank / shape / dtype).
        cp = pltpu.make_async_copy(x_hbm, o_hbm, sem.at[0])
        cp.start()
        cp.wait()
    else:
        # A few concurrent leading-dim chunk DMAs (static starts / sizes),
        # issued back-to-back and then all waited on.
        for c, (start, size) in enumerate(chunks):
            pltpu.make_async_copy(
                x_hbm.at[pl.ds(start, size)],
                o_hbm.at[pl.ds(start, size)],
                sem.at[c],
            ).start()
        for c, (start, size) in enumerate(chunks):
            pltpu.make_async_copy(
                x_hbm.at[pl.ds(start, size)],
                o_hbm.at[pl.ds(start, size)],
                sem.at[c],
            ).wait()


def identity_pallas(x, *, assume_donated=False):
    """Identity forward pass: exactly reproduces `return x` (shape & dtype)."""
    if assume_donated:
        # Caller donates x (e.g. jit donate_argnums): identity needs no data
        # movement at all -- no pallas_call, no HBM traffic, no defensive copy.
        return x
    if x.size == 0:
        return x

    itemsize = jnp.dtype(x.dtype).itemsize
    nbytes = int(x.size) * itemsize

    # Chunking policy: small inputs -> one DMA. Large inputs with a splittable
    # leading dim -> up to 4 concurrent DMAs so several DMA engines overlap.
    chunks = None
    num_chunks = 1
    if x.ndim >= 1 and int(x.shape[0]) >= 2 and nbytes >= (8 << 20):
        lead = int(x.shape[0])
        num_chunks = min(4, lead)
        base, rem = divmod(lead, num_chunks)
        chunks = []
        start = 0
        for c in range(num_chunks):
            size = base + (1 if c < rem else 0)
            chunks.append((start, size))
            start += size

    kernel = functools.partial(_identity_dma_kernel, chunks=chunks)

    return pl.pallas_call(
        kernel,
        out_shape=jax.ShapeDtypeStruct(x.shape, x.dtype),
        in_specs=[pl.BlockSpec(memory_space=pl.ANY)],
        out_specs=pl.BlockSpec(memory_space=pl.ANY),
        scratch_shapes=[pltpu.SemaphoreType.DMA((num_chunks,))],
        cost_estimate=pl.CostEstimate(
            flops=0, transcendentals=0, bytes_accessed=2 * nbytes
        ),
    )(x)


if __name__ == "__main__":
    key = jax.random.PRNGKey(0)
    # Small NCHW feature map consistent with how Identity is used (replacing
    # layers inside a conv net): batch=2, channels=4, spatial=16x16.
    x = jax.random.normal(key, (2, 4, 16, 16), dtype=jnp.float32)

    y = identity_pallas(x)
    jax.block_until_ready(y)

    assert y.shape == x.shape and y.dtype == x.dtype
    assert bool(jnp.all(y == x))
    print("KERNEL_OK")
</pallas_src>

<mosaic_0001>
module attributes {stable_mosaic.version = 11 : i64} {
  func.func @_identity_dma_kernel(%arg0: memref<2x4x16x16xf32, #tpu.memory_space<any>>, %arg1: memref<2x4x16x16xf32, #tpu.memory_space<any>>, %arg2: memref<1x!tpu.dma_semaphore, #tpu.memory_space<semaphore_mem>>) attributes {dimension_semantics = [], scalar_prefetch = 0 : i64, scratch_operands = 1 : i64, tpu.core_type = #tpu.core_type<tc>} {
    %c0_i32 = arith.constant 0 : i32
    %0 = tpu.memref_slice %arg2[%c0_i32] : memref<1x!tpu.dma_semaphore, #tpu.memory_space<semaphore_mem>> -> memref<1x!tpu.dma_semaphore, #tpu.memory_space<semaphore_mem>>
    %1 = tpu.memref_squeeze %0 : memref<1x!tpu.dma_semaphore, #tpu.memory_space<semaphore_mem>> -> memref<!tpu.dma_semaphore, #tpu.memory_space<semaphore_mem>>
    tpu.enqueue_dma source(%arg0 : memref<2x4x16x16xf32, #tpu.memory_space<any>>) target(%arg1 : memref<2x4x16x16xf32, #tpu.memory_space<any>>) target_semaphore(%1 : memref<!tpu.dma_semaphore, #tpu.memory_space<semaphore_mem>>)
    %c0_i32_0 = arith.constant 0 : i32
    %2 = tpu.memref_slice %arg2[%c0_i32_0] : memref<1x!tpu.dma_semaphore, #tpu.memory_space<semaphore_mem>> -> memref<1x!tpu.dma_semaphore, #tpu.memory_space<semaphore_mem>>
    %3 = tpu.memref_squeeze %2 : memref<1x!tpu.dma_semaphore, #tpu.memory_space<semaphore_mem>> -> memref<!tpu.dma_semaphore, #tpu.memory_space<semaphore_mem>>
    tpu.wait_dma2 semaphore(%3 : memref<!tpu.dma_semaphore, #tpu.memory_space<semaphore_mem>>) src(%arg0 : memref<2x4x16x16xf32, #tpu.memory_space<any>>) dst(%arg1 : memref<2x4x16x16xf32, #tpu.memory_space<any>>)
    return
  }
}

</mosaic_0001>

<llo_original>
// kernel: tpu_custom_call.1
$region0: #{tpu_custom_call.1}
  #allocation0 [shape = 'u32[]', space=smem, size = 0x4, offset = 0x4, fixed_abs, tag = 'smem constant byte address 0x4 - core index']
  #allocation1 [shape = 'u32[72,128]{1,0:T(1,128)}', space=vmem, size = 0x9000, scoped, tag = 'internal scratch']
  #allocation2 [shape = 's32[1]{0}', space=sflag, size = 0x4, scoped, tag = 'scratch operand']
  #allocation3 [shape = 's32[]', space=sflag, size = 0x4, offset = 0, fixed_abs, tag = 'sflag constant byte address 0x0 - dummy sync flag']
  #allocation4 [shape = 'u32[0]{0}', space=smem, size = 0, offset = 0, fixed_abs, tag = 'smem constant byte address 0x0 - null']
  %s0 = inlined_call_operand.hbm [shape: f32[2,4,16,16], index: 0, kind: input, shape index: {}]
  %s1 = inlined_call_operand.hbm [shape: f32[2,4,16,16], index: 1, kind: output, shape index: {}]
  %s2 = sld [smem:[#allocation0]]
  $region2: #{tpu_custom_call.1} parent=0
    _
  %s4 = ssub.s32 1, %s2
  %s5 = scalar_select 0, %s4, %s2
  %s7 = sshll.u32 1, 14
  %s8 = sxor.u32 4294967295, %s7
  %s10 = sshll.u32 %s0, 4
  %s11 = int_to_ptr.hbm [resolvable:$true] %s10
  %s12 = sshll.u32 %s1, 4
  %s13 = int_to_ptr.hbm [resolvable:$true] %s12
  %16 = dma.general %s11, 2048, %s13, [#allocation2], [#allocation3], [#allocation4], 0, 0
  %s17 = smul.u32 2, 4
  %s18 = smul.u32 %s17, 16
  %s19 = smul.u32 %s18, 1
  %s20 = sshll.u32 %s19, 4
  %21 = dma.done [#allocation2], %s20
  %22 = vsyncmov [#allocation2]
  %s23 = vpop.sfrf %22
  %p24 = scmp.eq.s32.totalorder %s23, 0
  %p25 = pneg %p24
  %27 = shalt.err (%p25)

</llo_original>
